<compile_context>
chip_gen: v7x
topology: tpu7x:2x2x1
jax: 0.10.0
libtpu: 0.0.40
codegen_flags: <defaults>
</compile_context>

<pallas_src>
import math
from functools import partial

import jax
import jax.numpy as jnp
from jax import lax
from jax.experimental import pallas as pl
from jax.experimental.pallas import tpu as pltpu

NUM_BINS = 21
SIGMA = 0.0167
ALFA = 1.0 / math.sqrt(2.0 * math.pi * SIGMA ** 2)   # cancels in normalization (not used in kernel)
BETA = -1.0 / (2.0 * SIGMA ** 2)
SQRT_NEG_BETA = math.sqrt(-BETA)

# Sentinel (in prescaled units) written onto padded instance rows. For every bin,
# (sp_scaled - sentinel)^2 >= ~3300, so exp(-...) underflows to exactly 0.0 and the
# padded rows contribute nothing to the bin sums or the norm.
_PAD_SENTINEL = 100.0


def _round_up(x, m):
    return ((x + m - 1) // m) * m


def _dist_pool_kernel(data_ref, out_ref, acc_ref, *,
                      num_instances, tn, num_bins, mask_rows):
    # data_ref block: (1, TN, TF)     input chunk (instances x features)
    # out_ref  block: (1, NUM_BINS, TF)  written only on the last instance chunk
    # acc_ref scratch: (NUM_BINS, TF)    unnormalized bin sums, persists over chunks
    n_idx = pl.program_id(2)

    @pl.when(n_idx == 0)
    def _init():
        acc_ref[...] = jnp.zeros_like(acc_ref)

    # One-time prescale: exp(BETA*(sp - x)^2) == exp(-(sp*sqrt(-BETA) - x*sqrt(-BETA))^2)
    scaled = data_ref[0] * SQRT_NEG_BETA                       # (TN, TF)

    if mask_rows:
        row_ids = n_idx * tn + lax.broadcasted_iota(jnp.int32, scaled.shape, 0)
        scaled = jnp.where(row_ids < num_instances, scaled, _PAD_SENTINEL)

    # Static unrolled loop over bins; sample points are compile-time constants.
    for k in range(num_bins):
        sp = (k / (num_bins - 1)) * SQRT_NEG_BETA              # scaled sample point
        d = sp - scaled
        g = jnp.exp(-(d * d))                                  # ALFA dropped (cancels)
        acc_ref[pl.ds(k, 1), :] += jnp.sum(g, axis=0, keepdims=True)   # stream per-bin row

    @pl.when(n_idx == pl.num_programs(2) - 1)
    def _finalize():
        acc = acc_ref[...]                                     # (NUM_BINS, TF)
        norm = jnp.sum(acc, axis=0, keepdims=True)             # (1, TF) sum over bins
        out_ref[0] = acc * pl.reciprocal(norm)                 # exact recip + muls


def distribution_pooling_filter(data):
    """data: (batch, num_instances, num_features) -> (batch, num_features, NUM_BINS)."""
    data = jnp.asarray(data, jnp.float32)
    batch, num_instances, num_features = data.shape

    # Feature tiling (lane axis): pad to multiple of 128, pick largest dividing tile.
    f_pad = _round_up(num_features, 128)
    if f_pad % 512 == 0:
        tf = 512
    elif f_pad % 256 == 0:
        tf = 256
    else:
        tf = 128

    # Instance chunking (reduction axis): bound VMEM regardless of bag size.
    tn = min(_round_up(num_instances, 8), 1024)
    n_pad = _round_up(num_instances, tn)

    pad_n = n_pad - num_instances
    pad_f = f_pad - num_features
    if pad_n or pad_f:
        data = jnp.pad(data, ((0, 0), (0, pad_n), (0, pad_f)))

    kernel = partial(
        _dist_pool_kernel,
        num_instances=num_instances,
        tn=tn,
        num_bins=NUM_BINS,
        mask_rows=pad_n > 0,
    )

    out_bins_first = pl.pallas_call(
        kernel,
        out_shape=jax.ShapeDtypeStruct((batch, NUM_BINS, f_pad), jnp.float32),
        grid_spec=pltpu.PrefetchScalarGridSpec(
            num_scalar_prefetch=0,
            grid=(batch, f_pad // tf, n_pad // tn),
            in_specs=[pl.BlockSpec((1, tn, tf), lambda b, f, n: (b, n, f))],
            out_specs=pl.BlockSpec((1, NUM_BINS, tf), lambda b, f, n: (b, 0, f)),
            scratch_shapes=[pltpu.VMEM((NUM_BINS, tf), jnp.float32)],
        ),
        compiler_params=pltpu.CompilerParams(
            dimension_semantics=("parallel", "parallel", "arbitrary"),
            vmem_limit_bytes=32 * 1024 * 1024,
        ),
    )(data)

    # Slice off feature padding, then bins-first -> (batch, num_features, num_bins).
    # TODO(synk): drop this transpose if downstream can consume (batch, num_bins, num_features).
    return jnp.transpose(out_bins_first[:, :, :num_features], (0, 2, 1))


def _reference(data):
    # Pure-JAX reference mirroring the PyTorch forward exactly.
    data = data.astype(jnp.float32)
    sample_points = jnp.linspace(0.0, 1.0, NUM_BINS, dtype=jnp.float32)
    diff = sample_points[None, None, None, :] - data[..., None]   # (b, n, f, bins)
    result = ALFA * jnp.exp(BETA * diff * diff)
    out_unnorm = jnp.sum(result, axis=1)                          # (b, f, bins)
    norm = jnp.sum(out_unnorm, axis=2, keepdims=True)             # (b, f, 1)
    return out_unnorm / norm


if __name__ == "__main__":
    key = jax.random.PRNGKey(0)
    k1, k2 = jax.random.split(key)

    # Case 1: small aligned-after-padding shape (batch=2, N=8, F=32).
    d1 = jax.random.uniform(k1, (2, 8, 32), dtype=jnp.float32)
    o1 = jax.block_until_ready(distribution_pooling_filter(d1))
    r1 = _reference(d1)
    assert o1.shape == (2, 32, NUM_BINS)
    assert jnp.allclose(o1, r1, atol=1e-5, rtol=1e-5), float(jnp.max(jnp.abs(o1 - r1)))

    # Case 2: ragged shape exercising instance masking + feature padding.
    d2 = jax.random.uniform(k2, (3, 13, 200), dtype=jnp.float32)
    o2 = jax.block_until_ready(distribution_pooling_filter(d2))
    r2 = _reference(d2)
    assert o2.shape == (3, 200, NUM_BINS)
    assert jnp.allclose(o2, r2, atol=1e-5, rtol=1e-5), float(jnp.max(jnp.abs(o2 - r2)))

    print("KERNEL_OK")
</pallas_src>

<mosaic_0001>
module attributes {stable_mosaic.version = 11 : i64} {
  func.func @_dist_pool_kernel(%arg0: i32, %arg1: i32, %arg2: i32, %arg3: memref<1x8x128xf32, #tpu.memory_space<vmem>>, %arg4: memref<1x21x128xf32, #tpu.memory_space<vmem>>, %arg5: memref<21x128xf32, #tpu.memory_space<vmem>>) attributes {dimension_semantics = [#tpu.dimension_semantics<parallel>, #tpu.dimension_semantics<parallel>, #tpu.dimension_semantics<arbitrary>], iteration_bounds = array<i64: 2, 1, 1>, scalar_prefetch = 0 : i64, scratch_operands = 1 : i64, tpu.core_type = #tpu.core_type<tc>, window_params = [{transform_indices = @transform_0, window_bounds = array<i64: 1, 8, 128>}, {transform_indices = @transform_1, window_bounds = array<i64: 1, 21, 128>}]} {
    %c0_i32 = arith.constant 0 : i32
    %0 = arith.cmpi eq, %arg2, %c0_i32 : i32
    %1 = arith.extui %0 : i1 to i32
    %c0_i32_0 = arith.constant 0 : i32
    %2 = arith.cmpi ne, %1, %c0_i32_0 : i32
    scf.if %2 {
      %cst_132 = arith.constant 0.000000e+00 : f32
      %241 = vector.broadcast %cst_132 : f32 to vector<21x128xf32>
      %c0_133 = arith.constant 0 : index
      %c0_134 = arith.constant 0 : index
      %242 = vector.load %arg5[%c0_133, %c0_134] : memref<21x128xf32, #tpu.memory_space<vmem>>, vector<21x128xf32>
      tpu.vector_store %arg5[%c0_133, %c0_134], %241 {strides = array<i32>} : memref<21x128xf32, #tpu.memory_space<vmem>>, vector<21x128xf32>,
    } else {
    }
    %c0 = arith.constant 0 : index
    %c0_1 = arith.constant 0 : index
    %c0_2 = arith.constant 0 : index
    %3 = vector.load %arg3[%c0, %c0_1, %c0_2] : memref<1x8x128xf32, #tpu.memory_space<vmem>>, vector<1x8x128xf32>
    %4 = vector.shape_cast %3 : vector<1x8x128xf32> to vector<8x128xf32>
    %cst = arith.constant 42.3417244 : f32
    %5 = vector.broadcast %cst : f32 to vector<8x128xf32>
    %6 = arith.mulf %4, %5 : vector<8x128xf32>
    %cst_3 = arith.constant 0.000000e+00 : f32
    %7 = vector.broadcast %cst_3 : f32 to vector<8x128xf32>
    %8 = arith.subf %7, %6 : vector<8x128xf32>
    %9 = arith.mulf %8, %8 : vector<8x128xf32>
    %cst_4 = arith.constant 0.000000e+00 : f32
    %10 = vector.broadcast %cst_4 : f32 to vector<8x128xf32>
    %11 = arith.subf %10, %9 : vector<8x128xf32>
    %12 = math.exp %11 : vector<8x128xf32>
    %c0_5 = arith.constant 0 : index
    %c0_6 = arith.constant 0 : index
    %13 = vector.load %arg5[%c0_5, %c0_6] : memref<21x128xf32, #tpu.memory_space<vmem>>, vector<1x128xf32>
    %cst_7 = arith.constant dense<0.000000e+00> : vector<128xf32>
    %14 = vector.multi_reduction <add>, %12, %cst_7 [0] : vector<8x128xf32> to vector<128xf32>
    %15 = vector.shape_cast %14 : vector<128xf32> to vector<1x128xf32>
    %16 = arith.addf %13, %15 : vector<1x128xf32>
    %c0_8 = arith.constant 0 : index
    %c0_9 = arith.constant 0 : index
    %17 = vector.load %arg5[%c0_8, %c0_9] : memref<21x128xf32, #tpu.memory_space<vmem>>, vector<1x128xf32>
    tpu.vector_store %arg5[%c0_8, %c0_9], %16 {strides = array<i32>} : memref<21x128xf32, #tpu.memory_space<vmem>>, vector<1x128xf32>,
    %cst_10 = arith.constant 2.11708617 : f32
    %18 = vector.broadcast %cst_10 : f32 to vector<8x128xf32>
    %19 = arith.subf %18, %6 : vector<8x128xf32>
    %20 = arith.mulf %19, %19 : vector<8x128xf32>
    %cst_11 = arith.constant 0.000000e+00 : f32
    %21 = vector.broadcast %cst_11 : f32 to vector<8x128xf32>
    %22 = arith.subf %21, %20 : vector<8x128xf32>
    %23 = math.exp %22 : vector<8x128xf32>
    %c1 = arith.constant 1 : index
    %c0_12 = arith.constant 0 : index
    %24 = vector.load %arg5[%c1, %c0_12] : memref<21x128xf32, #tpu.memory_space<vmem>>, vector<1x128xf32>
    %cst_13 = arith.constant dense<0.000000e+00> : vector<128xf32>
    %25 = vector.multi_reduction <add>, %23, %cst_13 [0] : vector<8x128xf32> to vector<128xf32>
    %26 = vector.shape_cast %25 : vector<128xf32> to vector<1x128xf32>
    %27 = arith.addf %24, %26 : vector<1x128xf32>
    %c1_14 = arith.constant 1 : index
    %c0_15 = arith.constant 0 : index
    %28 = vector.load %arg5[%c1_14, %c0_15] : memref<21x128xf32, #tpu.memory_space<vmem>>, vector<1x128xf32>
    tpu.vector_store %arg5[%c1_14, %c0_15], %27 {strides = array<i32>} : memref<21x128xf32, #tpu.memory_space<vmem>>, vector<1x128xf32>,
    %cst_16 = arith.constant 4.23417234 : f32
    %29 = vector.broadcast %cst_16 : f32 to vector<8x128xf32>
    %30 = arith.subf %29, %6 : vector<8x128xf32>
    %31 = arith.mulf %30, %30 : vector<8x128xf32>
    %cst_17 = arith.constant 0.000000e+00 : f32
    %32 = vector.broadcast %cst_17 : f32 to vector<8x128xf32>
    %33 = arith.subf %32, %31 : vector<8x128xf32>
    %34 = math.exp %33 : vector<8x128xf32>
    %c2 = arith.constant 2 : index
    %c0_18 = arith.constant 0 : index
    %35 = vector.load %arg5[%c2, %c0_18] : memref<21x128xf32, #tpu.memory_space<vmem>>, vector<1x128xf32>
    %cst_19 = arith.constant dense<0.000000e+00> : vector<128xf32>
    %36 = vector.multi_reduction <add>, %34, %cst_19 [0] : vector<8x128xf32> to vector<128xf32>
    %37 = vector.shape_cast %36 : vector<128xf32> to vector<1x128xf32>
    %38 = arith.addf %35, %37 : vector<1x128xf32>
    %c2_20 = arith.constant 2 : index
    %c0_21 = arith.constant 0 : index
    %39 = vector.load %arg5[%c2_20, %c0_21] : memref<21x128xf32, #tpu.memory_space<vmem>>, vector<1x128xf32>
    tpu.vector_store %arg5[%c2_20, %c0_21], %38 {strides = array<i32>} : memref<21x128xf32, #tpu.memory_space<vmem>>, vector<1x128xf32>,
    %cst_22 = arith.constant 6.35125827 : f32
    %40 = vector.broadcast %cst_22 : f32 to vector<8x128xf32>
    %41 = arith.subf %40, %6 : vector<8x128xf32>
    %42 = arith.mulf %41, %41 : vector<8x128xf32>
    %cst_23 = arith.constant 0.000000e+00 : f32
    %43 = vector.broadcast %cst_23 : f32 to vector<8x128xf32>
    %44 = arith.subf %43, %42 : vector<8x128xf32>
    %45 = math.exp %44 : vector<8x128xf32>
    %c3 = arith.constant 3 : index
    %c0_24 = arith.constant 0 : index
    %46 = vector.load %arg5[%c3, %c0_24] : memref<21x128xf32, #tpu.memory_space<vmem>>, vector<1x128xf32>
    %cst_25 = arith.constant dense<0.000000e+00> : vector<128xf32>
    %47 = vector.multi_reduction <add>, %45, %cst_25 [0] : vector<8x128xf32> to vector<128xf32>
    %48 = vector.shape_cast %47 : vector<128xf32> to vector<1x128xf32>
    %49 = arith.addf %46, %48 : vector<1x128xf32>
    %c3_26 = arith.constant 3 : index
    %c0_27 = arith.constant 0 : index
    %50 = vector.load %arg5[%c3_26, %c0_27] : memref<21x128xf32, #tpu.memory_space<vmem>>, vector<1x128xf32>
    tpu.vector_store %arg5[%c3_26, %c0_27], %49 {strides = array<i32>} : memref<21x128xf32, #tpu.memory_space<vmem>>, vector<1x128xf32>,
    %cst_28 = arith.constant 8.46834468 : f32
    %51 = vector.broadcast %cst_28 : f32 to vector<8x128xf32>
    %52 = arith.subf %51, %6 : vector<8x128xf32>
    %53 = arith.mulf %52, %52 : vector<8x128xf32>
    %cst_29 = arith.constant 0.000000e+00 : f32
    %54 = vector.broadcast %cst_29 : f32 to vector<8x128xf32>
    %55 = arith.subf %54, %53 : vector<8x128xf32>
    %56 = math.exp %55 : vector<8x128xf32>
    %c4 = arith.constant 4 : index
    %c0_30 = arith.constant 0 : index
    %57 = vector.load %arg5[%c4, %c0_30] : memref<21x128xf32, #tpu.memory_space<vmem>>, vector<1x128xf32>
    %cst_31 = arith.constant dense<0.000000e+00> : vector<128xf32>
    %58 = vector.multi_reduction <add>, %56, %cst_31 [0] : vector<8x128xf32> to vector<128xf32>
    %59 = vector.shape_cast %58 : vector<128xf32> to vector<1x128xf32>
    %60 = arith.addf %57, %59 : vector<1x128xf32>
    %c4_32 = arith.constant 4 : index
    %c0_33 = arith.constant 0 : index
    %61 = vector.load %arg5[%c4_32, %c0_33] : memref<21x128xf32, #tpu.memory_space<vmem>>, vector<1x128xf32>
    tpu.vector_store %arg5[%c4_32, %c0_33], %60 {strides = array<i32>} : memref<21x128xf32, #tpu.memory_space<vmem>>, vector<1x128xf32>,
    %cst_34 = arith.constant 10.5854311 : f32
    %62 = vector.broadcast %cst_34 : f32 to vector<8x128xf32>
    %63 = arith.subf %62, %6 : vector<8x128xf32>
    %64 = arith.mulf %63, %63 : vector<8x128xf32>
    %cst_35 = arith.constant 0.000000e+00 : f32
    %65 = vector.broadcast %cst_35 : f32 to vector<8x128xf32>
    %66 = arith.subf %65, %64 : vector<8x128xf32>
    %67 = math.exp %66 : vector<8x128xf32>
    %c5 = arith.constant 5 : index
    %c0_36 = arith.constant 0 : index
    %68 = vector.load %arg5[%c5, %c0_36] : memref<21x128xf32, #tpu.memory_space<vmem>>, vector<1x128xf32>
    %cst_37 = arith.constant dense<0.000000e+00> : vector<128xf32>
    %69 = vector.multi_reduction <add>, %67, %cst_37 [0] : vector<8x128xf32> to vector<128xf32>
    %70 = vector.shape_cast %69 : vector<128xf32> to vector<1x128xf32>
    %71 = arith.addf %68, %70 : vector<1x128xf32>
    %c5_38 = arith.constant 5 : index
    %c0_39 = arith.constant 0 : index
    %72 = vector.load %arg5[%c5_38, %c0_39] : memref<21x128xf32, #tpu.memory_space<vmem>>, vector<1x128xf32>
    tpu.vector_store %arg5[%c5_38, %c0_39], %71 {strides = array<i32>} : memref<21x128xf32, #tpu.memory_space<vmem>>, vector<1x128xf32>,
    %cst_40 = arith.constant 12.7025166 : f32
    %73 = vector.broadcast %cst_40 : f32 to vector<8x128xf32>
    %74 = arith.subf %73, %6 : vector<8x128xf32>
    %75 = arith.mulf %74, %74 : vector<8x128xf32>
    %cst_41 = arith.constant 0.000000e+00 : f32
    %76 = vector.broadcast %cst_41 : f32 to vector<8x128xf32>
    %77 = arith.subf %76, %75 : vector<8x128xf32>
    %78 = math.exp %77 : vector<8x128xf32>
    %c6 = arith.constant 6 : index
    %c0_42 = arith.constant 0 : index
    %79 = vector.load %arg5[%c6, %c0_42] : memref<21x128xf32, #tpu.memory_space<vmem>>, vector<1x128xf32>
    %cst_43 = arith.constant dense<0.000000e+00> : vector<128xf32>
    %80 = vector.multi_reduction <add>, %78, %cst_43 [0] : vector<8x128xf32> to vector<128xf32>
    %81 = vector.shape_cast %80 : vector<128xf32> to vector<1x128xf32>
    %82 = arith.addf %79, %81 : vector<1x128xf32>
    %c6_44 = arith.constant 6 : index
    %c0_45 = arith.constant 0 : index
    %83 = vector.load %arg5[%c6_44, %c0_45] : memref<21x128xf32, #tpu.memory_space<vmem>>, vector<1x128xf32>
    tpu.vector_store %arg5[%c6_44, %c0_45], %82 {strides = array<i32>} : memref<21x128xf32, #tpu.memory_space<vmem>>, vector<1x128xf32>,
    %cst_46 = arith.constant 14.819603 : f32
    %84 = vector.broadcast %cst_46 : f32 to vector<8x128xf32>
    %85 = arith.subf %84, %6 : vector<8x128xf32>
    %86 = arith.mulf %85, %85 : vector<8x128xf32>
    %cst_47 = arith.constant 0.000000e+00 : f32
    %87 = vector.broadcast %cst_47 : f32 to vector<8x128xf32>
    %88 = arith.subf %87, %86 : vector<8x128xf32>
    %89 = math.exp %88 : vector<8x128xf32>
    %c7 = arith.constant 7 : index
    %c0_48 = arith.constant 0 : index
    %90 = vector.load %arg5[%c7, %c0_48] : memref<21x128xf32, #tpu.memory_space<vmem>>, vector<1x128xf32>
    %cst_49 = arith.constant dense<0.000000e+00> : vector<128xf32>
    %91 = vector.multi_reduction <add>, %89, %cst_49 [0] : vector<8x128xf32> to vector<128xf32>
    %92 = vector.shape_cast %91 : vector<128xf32> to vector<1x128xf32>
    %93 = arith.addf %90, %92 : vector<1x128xf32>
    %c7_50 = arith.constant 7 : index
    %c0_51 = arith.constant 0 : index
    %94 = vector.load %arg5[%c7_50, %c0_51] : memref<21x128xf32, #tpu.memory_space<vmem>>, vector<1x128xf32>
    tpu.vector_store %arg5[%c7_50, %c0_51], %93 {strides = array<i32>} : memref<21x128xf32, #tpu.memory_space<vmem>>, vector<1x128xf32>,
    %cst_52 = arith.constant 16.9366894 : f32
    %95 = vector.broadcast %cst_52 : f32 to vector<8x128xf32>
    %96 = arith.subf %95, %6 : vector<8x128xf32>
    %97 = arith.mulf %96, %96 : vector<8x128xf32>
    %cst_53 = arith.constant 0.000000e+00 : f32
    %98 = vector.broadcast %cst_53 : f32 to vector<8x128xf32>
    %99 = arith.subf %98, %97 : vector<8x128xf32>
    %100 = math.exp %99 : vector<8x128xf32>
    %c8 = arith.constant 8 : index
    %c0_54 = arith.constant 0 : index
    %101 = vector.load %arg5[%c8, %c0_54] : memref<21x128xf32, #tpu.memory_space<vmem>>, vector<1x128xf32>
    %cst_55 = arith.constant dense<0.000000e+00> : vector<128xf32>
    %102 = vector.multi_reduction <add>, %100, %cst_55 [0] : vector<8x128xf32> to vector<128xf32>
    %103 = vector.shape_cast %102 : vector<128xf32> to vector<1x128xf32>
    %104 = arith.addf %101, %103 : vector<1x128xf32>
    %c8_56 = arith.constant 8 : index
    %c0_57 = arith.constant 0 : index
    %105 = vector.load %arg5[%c8_56, %c0_57] : memref<21x128xf32, #tpu.memory_space<vmem>>, vector<1x128xf32>
    tpu.vector_store %arg5[%c8_56, %c0_57], %104 {strides = array<i32>} : memref<21x128xf32, #tpu.memory_space<vmem>>, vector<1x128xf32>,
    %cst_58 = arith.constant 19.0537758 : f32
    %106 = vector.broadcast %cst_58 : f32 to vector<8x128xf32>
    %107 = arith.subf %106, %6 : vector<8x128xf32>
    %108 = arith.mulf %107, %107 : vector<8x128xf32>
    %cst_59 = arith.constant 0.000000e+00 : f32
    %109 = vector.broadcast %cst_59 : f32 to vector<8x128xf32>
    %110 = arith.subf %109, %108 : vector<8x128xf32>
    %111 = math.exp %110 : vector<8x128xf32>
    %c9 = arith.constant 9 : index
    %c0_60 = arith.constant 0 : index
    %112 = vector.load %arg5[%c9, %c0_60] : memref<21x128xf32, #tpu.memory_space<vmem>>, vector<1x128xf32>
    %cst_61 = arith.constant dense<0.000000e+00> : vector<128xf32>
    %113 = vector.multi_reduction <add>, %111, %cst_61 [0] : vector<8x128xf32> to vector<128xf32>
    %114 = vector.shape_cast %113 : vector<128xf32> to vector<1x128xf32>
    %115 = arith.addf %112, %114 : vector<1x128xf32>
    %c9_62 = arith.constant 9 : index
    %c0_63 = arith.constant 0 : index
    %116 = vector.load %arg5[%c9_62, %c0_63] : memref<21x128xf32, #tpu.memory_space<vmem>>, vector<1x128xf32>
    tpu.vector_store %arg5[%c9_62, %c0_63], %115 {strides = array<i32>} : memref<21x128xf32, #tpu.memory_space<vmem>>, vector<1x128xf32>,
    %cst_64 = arith.constant 21.1708622 : f32
    %117 = vector.broadcast %cst_64 : f32 to vector<8x128xf32>
    %118 = arith.subf %117, %6 : vector<8x128xf32>
    %119 = arith.mulf %118, %118 : vector<8x128xf32>
    %cst_65 = arith.constant 0.000000e+00 : f32
    %120 = vector.broadcast %cst_65 : f32 to vector<8x128xf32>
    %121 = arith.subf %120, %119 : vector<8x128xf32>
    %122 = math.exp %121 : vector<8x128xf32>
    %c10 = arith.constant 10 : index
    %c0_66 = arith.constant 0 : index
    %123 = vector.load %arg5[%c10, %c0_66] : memref<21x128xf32, #tpu.memory_space<vmem>>, vector<1x128xf32>
    %cst_67 = arith.constant dense<0.000000e+00> : vector<128xf32>
    %124 = vector.multi_reduction <add>, %122, %cst_67 [0] : vector<8x128xf32> to vector<128xf32>
    %125 = vector.shape_cast %124 : vector<128xf32> to vector<1x128xf32>
    %126 = arith.addf %123, %125 : vector<1x128xf32>
    %c10_68 = arith.constant 10 : index
    %c0_69 = arith.constant 0 : index
    %127 = vector.load %arg5[%c10_68, %c0_69] : memref<21x128xf32, #tpu.memory_space<vmem>>, vector<1x128xf32>
    tpu.vector_store %arg5[%c10_68, %c0_69], %126 {strides = array<i32>} : memref<21x128xf32, #tpu.memory_space<vmem>>, vector<1x128xf32>,
    %cst_70 = arith.constant 23.2879486 : f32
    %128 = vector.broadcast %cst_70 : f32 to vector<8x128xf32>
    %129 = arith.subf %128, %6 : vector<8x128xf32>
    %130 = arith.mulf %129, %129 : vector<8x128xf32>
    %cst_71 = arith.constant 0.000000e+00 : f32
    %131 = vector.broadcast %cst_71 : f32 to vector<8x128xf32>
    %132 = arith.subf %131, %130 : vector<8x128xf32>
    %133 = math.exp %132 : vector<8x128xf32>
    %c11 = arith.constant 11 : index
    %c0_72 = arith.constant 0 : index
    %134 = vector.load %arg5[%c11, %c0_72] : memref<21x128xf32, #tpu.memory_space<vmem>>, vector<1x128xf32>
    %cst_73 = arith.constant dense<0.000000e+00> : vector<128xf32>
    %135 = vector.multi_reduction <add>, %133, %cst_73 [0] : vector<8x128xf32> to vector<128xf32>
    %136 = vector.shape_cast %135 : vector<128xf32> to vector<1x128xf32>
    %137 = arith.addf %134, %136 : vector<1x128xf32>
    %c11_74 = arith.constant 11 : index
    %c0_75 = arith.constant 0 : index
    %138 = vector.load %arg5[%c11_74, %c0_75] : memref<21x128xf32, #tpu.memory_space<vmem>>, vector<1x128xf32>
    tpu.vector_store %arg5[%c11_74, %c0_75], %137 {strides = array<i32>} : memref<21x128xf32, #tpu.memory_space<vmem>>, vector<1x128xf32>,
    %cst_76 = arith.constant 25.4050331 : f32
    %139 = vector.broadcast %cst_76 : f32 to vector<8x128xf32>
    %140 = arith.subf %139, %6 : vector<8x128xf32>
    %141 = arith.mulf %140, %140 : vector<8x128xf32>
    %cst_77 = arith.constant 0.000000e+00 : f32
    %142 = vector.broadcast %cst_77 : f32 to vector<8x128xf32>
    %143 = arith.subf %142, %141 : vector<8x128xf32>
    %144 = math.exp %143 : vector<8x128xf32>
    %c12 = arith.constant 12 : index
    %c0_78 = arith.constant 0 : index
    %145 = vector.load %arg5[%c12, %c0_78] : memref<21x128xf32, #tpu.memory_space<vmem>>, vector<1x128xf32>
    %cst_79 = arith.constant dense<0.000000e+00> : vector<128xf32>
    %146 = vector.multi_reduction <add>, %144, %cst_79 [0] : vector<8x128xf32> to vector<128xf32>
    %147 = vector.shape_cast %146 : vector<128xf32> to vector<1x128xf32>
    %148 = arith.addf %145, %147 : vector<1x128xf32>
    %c12_80 = arith.constant 12 : index
    %c0_81 = arith.constant 0 : index
    %149 = vector.load %arg5[%c12_80, %c0_81] : memref<21x128xf32, #tpu.memory_space<vmem>>, vector<1x128xf32>
    tpu.vector_store %arg5[%c12_80, %c0_81], %148 {strides = array<i32>} : memref<21x128xf32, #tpu.memory_space<vmem>>, vector<1x128xf32>,
    %cst_82 = arith.constant 27.5221195 : f32
    %150 = vector.broadcast %cst_82 : f32 to vector<8x128xf32>
    %151 = arith.subf %150, %6 : vector<8x128xf32>
    %152 = arith.mulf %151, %151 : vector<8x128xf32>
    %cst_83 = arith.constant 0.000000e+00 : f32
    %153 = vector.broadcast %cst_83 : f32 to vector<8x128xf32>
    %154 = arith.subf %153, %152 : vector<8x128xf32>
    %155 = math.exp %154 : vector<8x128xf32>
    %c13 = arith.constant 13 : index
    %c0_84 = arith.constant 0 : index
    %156 = vector.load %arg5[%c13, %c0_84] : memref<21x128xf32, #tpu.memory_space<vmem>>, vector<1x128xf32>
    %cst_85 = arith.constant dense<0.000000e+00> : vector<128xf32>
    %157 = vector.multi_reduction <add>, %155, %cst_85 [0] : vector<8x128xf32> to vector<128xf32>
    %158 = vector.shape_cast %157 : vector<128xf32> to vector<1x128xf32>
    %159 = arith.addf %156, %158 : vector<1x128xf32>
    %c13_86 = arith.constant 13 : index
    %c0_87 = arith.constant 0 : index
    %160 = vector.load %arg5[%c13_86, %c0_87] : memref<21x128xf32, #tpu.memory_space<vmem>>, vector<1x128xf32>
    tpu.vector_store %arg5[%c13_86, %c0_87], %159 {strides = array<i32>} : memref<21x128xf32, #tpu.memory_space<vmem>>, vector<1x128xf32>,
    %cst_88 = arith.constant 29.6392059 : f32
    %161 = vector.broadcast %cst_88 : f32 to vector<8x128xf32>
    %162 = arith.subf %161, %6 : vector<8x128xf32>
    %163 = arith.mulf %162, %162 : vector<8x128xf32>
    %cst_89 = arith.constant 0.000000e+00 : f32
    %164 = vector.broadcast %cst_89 : f32 to vector<8x128xf32>
    %165 = arith.subf %164, %163 : vector<8x128xf32>
    %166 = math.exp %165 : vector<8x128xf32>
    %c14 = arith.constant 14 : index
    %c0_90 = arith.constant 0 : index
    %167 = vector.load %arg5[%c14, %c0_90] : memref<21x128xf32, #tpu.memory_space<vmem>>, vector<1x128xf32>
    %cst_91 = arith.constant dense<0.000000e+00> : vector<128xf32>
    %168 = vector.multi_reduction <add>, %166, %cst_91 [0] : vector<8x128xf32> to vector<128xf32>
    %169 = vector.shape_cast %168 : vector<128xf32> to vector<1x128xf32>
    %170 = arith.addf %167, %169 : vector<1x128xf32>
    %c14_92 = arith.constant 14 : index
    %c0_93 = arith.constant 0 : index
    %171 = vector.load %arg5[%c14_92, %c0_93] : memref<21x128xf32, #tpu.memory_space<vmem>>, vector<1x128xf32>
    tpu.vector_store %arg5[%c14_92, %c0_93], %170 {strides = array<i32>} : memref<21x128xf32, #tpu.memory_space<vmem>>, vector<1x128xf32>,
    %cst_94 = arith.constant 31.7562923 : f32
    %172 = vector.broadcast %cst_94 : f32 to vector<8x128xf32>
    %173 = arith.subf %172, %6 : vector<8x128xf32>
    %174 = arith.mulf %173, %173 : vector<8x128xf32>
    %cst_95 = arith.constant 0.000000e+00 : f32
    %175 = vector.broadcast %cst_95 : f32 to vector<8x128xf32>
    %176 = arith.subf %175, %174 : vector<8x128xf32>
    %177 = math.exp %176 : vector<8x128xf32>
    %c15 = arith.constant 15 : index
    %c0_96 = arith.constant 0 : index
    %178 = vector.load %arg5[%c15, %c0_96] : memref<21x128xf32, #tpu.memory_space<vmem>>, vector<1x128xf32>
    %cst_97 = arith.constant dense<0.000000e+00> : vector<128xf32>
    %179 = vector.multi_reduction <add>, %177, %cst_97 [0] : vector<8x128xf32> to vector<128xf32>
    %180 = vector.shape_cast %179 : vector<128xf32> to vector<1x128xf32>
    %181 = arith.addf %178, %180 : vector<1x128xf32>
    %c15_98 = arith.constant 15 : index
    %c0_99 = arith.constant 0 : index
    %182 = vector.load %arg5[%c15_98, %c0_99] : memref<21x128xf32, #tpu.memory_space<vmem>>, vector<1x128xf32>
    tpu.vector_store %arg5[%c15_98, %c0_99], %181 {strides = array<i32>} : memref<21x128xf32, #tpu.memory_space<vmem>>, vector<1x128xf32>,
    %cst_100 = arith.constant 33.8733788 : f32
    %183 = vector.broadcast %cst_100 : f32 to vector<8x128xf32>
    %184 = arith.subf %183, %6 : vector<8x128xf32>
    %185 = arith.mulf %184, %184 : vector<8x128xf32>
    %cst_101 = arith.constant 0.000000e+00 : f32
    %186 = vector.broadcast %cst_101 : f32 to vector<8x128xf32>
    %187 = arith.subf %186, %185 : vector<8x128xf32>
    %188 = math.exp %187 : vector<8x128xf32>
    %c16 = arith.constant 16 : index
    %c0_102 = arith.constant 0 : index
    %189 = vector.load %arg5[%c16, %c0_102] : memref<21x128xf32, #tpu.memory_space<vmem>>, vector<1x128xf32>
    %cst_103 = arith.constant dense<0.000000e+00> : vector<128xf32>
    %190 = vector.multi_reduction <add>, %188, %cst_103 [0] : vector<8x128xf32> to vector<128xf32>
    %191 = vector.shape_cast %190 : vector<128xf32> to vector<1x128xf32>
    %192 = arith.addf %189, %191 : vector<1x128xf32>
    %c16_104 = arith.constant 16 : index
    %c0_105 = arith.constant 0 : index
    %193 = vector.load %arg5[%c16_104, %c0_105] : memref<21x128xf32, #tpu.memory_space<vmem>>, vector<1x128xf32>
    tpu.vector_store %arg5[%c16_104, %c0_105], %192 {strides = array<i32>} : memref<21x128xf32, #tpu.memory_space<vmem>>, vector<1x128xf32>,
    %cst_106 = arith.constant 35.9904633 : f32
    %194 = vector.broadcast %cst_106 : f32 to vector<8x128xf32>
    %195 = arith.subf %194, %6 : vector<8x128xf32>
    %196 = arith.mulf %195, %195 : vector<8x128xf32>
    %cst_107 = arith.constant 0.000000e+00 : f32
    %197 = vector.broadcast %cst_107 : f32 to vector<8x128xf32>
    %198 = arith.subf %197, %196 : vector<8x128xf32>
    %199 = math.exp %198 : vector<8x128xf32>
    %c17 = arith.constant 17 : index
    %c0_108 = arith.constant 0 : index
    %200 = vector.load %arg5[%c17, %c0_108] : memref<21x128xf32, #tpu.memory_space<vmem>>, vector<1x128xf32>
    %cst_109 = arith.constant dense<0.000000e+00> : vector<128xf32>
    %201 = vector.multi_reduction <add>, %199, %cst_109 [0] : vector<8x128xf32> to vector<128xf32>
    %202 = vector.shape_cast %201 : vector<128xf32> to vector<1x128xf32>
    %203 = arith.addf %200, %202 : vector<1x128xf32>
    %c17_110 = arith.constant 17 : index
    %c0_111 = arith.constant 0 : index
    %204 = vector.load %arg5[%c17_110, %c0_111] : memref<21x128xf32, #tpu.memory_space<vmem>>, vector<1x128xf32>
    tpu.vector_store %arg5[%c17_110, %c0_111], %203 {strides = array<i32>} : memref<21x128xf32, #tpu.memory_space<vmem>>, vector<1x128xf32>,
    %cst_112 = arith.constant 38.1075516 : f32
    %205 = vector.broadcast %cst_112 : f32 to vector<8x128xf32>
    %206 = arith.subf %205, %6 : vector<8x128xf32>
    %207 = arith.mulf %206, %206 : vector<8x128xf32>
    %cst_113 = arith.constant 0.000000e+00 : f32
    %208 = vector.broadcast %cst_113 : f32 to vector<8x128xf32>
    %209 = arith.subf %208, %207 : vector<8x128xf32>
    %210 = math.exp %209 : vector<8x128xf32>
    %c18 = arith.constant 18 : index
    %c0_114 = arith.constant 0 : index
    %211 = vector.load %arg5[%c18, %c0_114] : memref<21x128xf32, #tpu.memory_space<vmem>>, vector<1x128xf32>
    %cst_115 = arith.constant dense<0.000000e+00> : vector<128xf32>
    %212 = vector.multi_reduction <add>, %210, %cst_115 [0] : vector<8x128xf32> to vector<128xf32>
    %213 = vector.shape_cast %212 : vector<128xf32> to vector<1x128xf32>
    %214 = arith.addf %211, %213 : vector<1x128xf32>
    %c18_116 = arith.constant 18 : index
    %c0_117 = arith.constant 0 : index
    %215 = vector.load %arg5[%c18_116, %c0_117] : memref<21x128xf32, #tpu.memory_space<vmem>>, vector<1x128xf32>
    tpu.vector_store %arg5[%c18_116, %c0_117], %214 {strides = array<i32>} : memref<21x128xf32, #tpu.memory_space<vmem>>, vector<1x128xf32>,
    %cst_118 = arith.constant 40.2246361 : f32
    %216 = vector.broadcast %cst_118 : f32 to vector<8x128xf32>
    %217 = arith.subf %216, %6 : vector<8x128xf32>
    %218 = arith.mulf %217, %217 : vector<8x128xf32>
    %cst_119 = arith.constant 0.000000e+00 : f32
    %219 = vector.broadcast %cst_119 : f32 to vector<8x128xf32>
    %220 = arith.subf %219, %218 : vector<8x128xf32>
    %221 = math.exp %220 : vector<8x128xf32>
    %c19 = arith.constant 19 : index
    %c0_120 = arith.constant 0 : index
    %222 = vector.load %arg5[%c19, %c0_120] : memref<21x128xf32, #tpu.memory_space<vmem>>, vector<1x128xf32>
    %cst_121 = arith.constant dense<0.000000e+00> : vector<128xf32>
    %223 = vector.multi_reduction <add>, %221, %cst_121 [0] : vector<8x128xf32> to vector<128xf32>
    %224 = vector.shape_cast %223 : vector<128xf32> to vector<1x128xf32>
    %225 = arith.addf %222, %224 : vector<1x128xf32>
    %c19_122 = arith.constant 19 : index
    %c0_123 = arith.constant 0 : index
    %226 = vector.load %arg5[%c19_122, %c0_123] : memref<21x128xf32, #tpu.memory_space<vmem>>, vector<1x128xf32>
    tpu.vector_store %arg5[%c19_122, %c0_123], %225 {strides = array<i32>} : memref<21x128xf32, #tpu.memory_space<vmem>>, vector<1x128xf32>,
    %cst_124 = arith.constant 42.3417244 : f32
    %227 = vector.broadcast %cst_124 : f32 to vector<8x128xf32>
    %228 = arith.subf %227, %6 : vector<8x128xf32>
    %229 = arith.mulf %228, %228 : vector<8x128xf32>
    %cst_125 = arith.constant 0.000000e+00 : f32
    %230 = vector.broadcast %cst_125 : f32 to vector<8x128xf32>
    %231 = arith.subf %230, %229 : vector<8x128xf32>
    %232 = math.exp %231 : vector<8x128xf32>
    %c20 = arith.constant 20 : index
    %c0_126 = arith.constant 0 : index
    %233 = vector.load %arg5[%c20, %c0_126] : memref<21x128xf32, #tpu.memory_space<vmem>>, vector<1x128xf32>
    %cst_127 = arith.constant dense<0.000000e+00> : vector<128xf32>
    %234 = vector.multi_reduction <add>, %232, %cst_127 [0] : vector<8x128xf32> to vector<128xf32>
    %235 = vector.shape_cast %234 : vector<128xf32> to vector<1x128xf32>
    %236 = arith.addf %233, %235 : vector<1x128xf32>
    %c20_128 = arith.constant 20 : index
    %c0_129 = arith.constant 0 : index
    %237 = vector.load %arg5[%c20_128, %c0_129] : memref<21x128xf32, #tpu.memory_space<vmem>>, vector<1x128xf32>
    tpu.vector_store %arg5[%c20_128, %c0_129], %236 {strides = array<i32>} : memref<21x128xf32, #tpu.memory_space<vmem>>, vector<1x128xf32>,
    %c0_i32_130 = arith.constant 0 : i32
    %238 = arith.cmpi eq, %arg2, %c0_i32_130 : i32
    %239 = arith.extui %238 : i1 to i32
    %c0_i32_131 = arith.constant 0 : i32
    %240 = arith.cmpi ne, %239, %c0_i32_131 : i32
    scf.if %240 {
      %c0_132 = arith.constant 0 : index
      %c0_133 = arith.constant 0 : index
      %241 = vector.load %arg5[%c0_132, %c0_133] : memref<21x128xf32, #tpu.memory_space<vmem>>, vector<21x128xf32>
      %cst_134 = arith.constant dense<0.000000e+00> : vector<128xf32>
      %242 = vector.multi_reduction <add>, %241, %cst_134 [0] : vector<21x128xf32> to vector<128xf32>
      %243 = vector.shape_cast %242 : vector<128xf32> to vector<1x128xf32>
      %244 = tpu.reciprocal %243 : vector<1x128xf32> -> vector<1x128xf32>
      %245 = vector.broadcast %244 : vector<1x128xf32> to vector<21x128xf32>
      %246 = arith.mulf %241, %245 : vector<21x128xf32>
      %c0_135 = arith.constant 0 : index
      %c0_136 = arith.constant 0 : index
      %c0_137 = arith.constant 0 : index
      %247 = vector.load %arg4[%c0_135, %c0_136, %c0_137] : memref<1x21x128xf32, #tpu.memory_space<vmem>>, vector<1x21x128xf32>
      %248 = vector.shape_cast %247 : vector<1x21x128xf32> to vector<21x128xf32>
      %249 = vector.shape_cast %246 : vector<21x128xf32> to vector<1x21x128xf32>
      tpu.vector_store %arg4[%c0_135, %c0_136, %c0_137], %249 {strides = array<i32>} : memref<1x21x128xf32, #tpu.memory_space<vmem>>, vector<1x21x128xf32>,
    } else {
    }
    return
  }
  func.func @transform_0(%arg0: i32, %arg1: i32, %arg2: i32) -> (i32, i32, i32) {
    %c0_i32 = arith.constant 0 : i32
    return %arg0, %arg2, %arg1 : i32, i32, i32
  }
  func.func @transform_1(%arg0: i32, %arg1: i32, %arg2: i32) -> (i32, i32, i32) {
    %c0_i32 = arith.constant 0 : i32
    %c0_i32_0 = arith.constant 0 : i32
    return %arg0, %c0_i32, %arg1 : i32, i32, i32
  }
}

</mosaic_0001>

<llo_original>
// kernel: tpu_custom_call.1
$region0: #{tpu_custom_call.1}
  #allocation0 [shape = 'u32[]', space=smem, size = 0x4, offset = 0x4, fixed_abs, tag = 'smem constant byte address 0x4 - core index']
  #allocation1 [shape = 'u32[144,128]{1,0:T(1,128)}', space=vmem, size = 0x12000, scoped, tag = 'internal scratch']
  #allocation2 [shape = 'f32[21,128]{1,0:T(8,128)}', space=vmem, size = 0x3000, scoped, tag = 'scratch operand']
  %s0 = inlined_call_operand.hbm [shape: f32[2,8,128], index: 0, kind: input, shape index: {}]
  %s1 = inlined_call_operand.vmem [shape: f32[2,21,128], index: 1, kind: output, shape index: {}]
  %s2 = sld [smem:[#allocation0]]
  $region49: #{tpu_custom_call.1} parent=0
    _
  %s4 = ssub.s32 1, %s2
  %s5 = scalar_select 0, %s4, %s2
  $region1: #{tpu_custom_call.1} parent=0
    #allocation3 [shape = 'u8[8192]{0}', space=vmem, size = 0x2000, scoped, tag = 'input window, operand 0']
    #allocation4 [shape = 's32[2]{0}', space=sflag, size = 0x8, scoped, tag = 'scoped memory for tpu_custom_call.1']
    %6 = vsyncpa [#allocation4], 0
    %s7 = scalar_lea.sflag [#allocation4], 1
    %8 = vsyncpa %s7, 0
    loop: start=0, step=1, limit=4
    $region2: #{tpu_custom_call.1} parent=1 // loop_pre_header
      _
    $region3: #{tpu_custom_call.1} parent=1 // loop_header
      %s10 = sphi 0, %s14
      %p11 = scmp.ge.s32.totalorder %s10, 4
      %s17 = sphi 0, %s36
      %s18 = sphi 0, %s32
      %s19 = sphi 0, %s28
      %s20 = sphi 0, %s17
      %s21 = sphi 0, %s18
      %s22 = sphi 0, %s19
      %s23 = sphi 0, %s20
      %s24 = sphi 0, %s21
      %s25 = sphi 0, %s22
      %s43 = sphi 0, %s45
      %s46 = sphi 0, %s43
      %s47 = sphi 0, %s46
      %s63 = sphi 0, %s47
      %s71 = sphi 0, %s73
      %s74 = sphi 0, %s71
      %s75 = sphi 0, %s74
      %s91 = sphi 0, %s75
    $region4: #{tpu_custom_call.1} parent=1 // loop_header_branch
      %13 = sbr.rel (%p11) target = $region8
    $region5: #{tpu_custom_call.1} parent=1 // loop_body
      %s15 = ssub.s32 %s10, 1
      %s16 = ssub.s32 %s10, 2
      %s26 = sadd.s32 1, %s19
      %p27 = scmp.ge.s32.totalorder %s26, 1
      %s28 = scalar_select %p27, 0, %s26
      %s29 = sadd.s32 1, %s18
      %s30 = scalar_select %p27, %s29, %s18
      %p31 = scmp.ge.s32.totalorder %s30, 1
      %s32 = scalar_select %p31, 0, %s30
      %s33 = sadd.s32 1, %s17
      %s34 = scalar_select %p31, %s33, %s17
      %p35 = scmp.ge.s32.totalorder %s34, 2
      %s36 = scalar_select %p35, 0, %s34
      %s37 = ssub.s32 %s17, %s36
      %s38 = ssub.s32 %s19, %s28
      %s39 = sor.u32 %s37, %s38
      %s40 = ssub.s32 %s18, %s32
      %s41 = sor.u32 %s39, %s40
      %p42 = scmp.eq.s32.totalorder %s41, 0
      %s44 = sadd.s32 %s43, 1
      %s45 = scalar_select %p42, %s43, %s44
      %p48 = pneg %p42
      %p49 = scmp.eq.s32.totalorder %s10, 1
      %p50 = por %p48, %p49
      %p51 = scmp.ne.s32.totalorder %s43, %s46
      %p52 = scmp.eq.s32.totalorder %s10, 0
      %p53 = por %p51, %p52
      %p54 = scmp.ne.s32.totalorder %s43, %s46
      %p55 = scmp.eq.s32.totalorder %s15, 1
      %p56 = por %p54, %p55
      %p57 = scmp.ne.s32.totalorder %s46, %s47
      %p58 = scmp.eq.s32.totalorder %s15, 0
      %p59 = por %p57, %p58
      %p60 = scmp.ne.s32.totalorder %s46, %s47
      %p61 = scmp.eq.s32.totalorder %s16, 1
      %p62 = por %p60, %p61
      %p64 = scmp.ne.s32.totalorder %s47, %s63
      %p65 = scmp.eq.s32.totalorder %s16, 0
      %p66 = por %p64, %p65
      %s67 = ssub.s32 %s17, %s36
      %s68 = ssub.s32 %s18, %s32
      %s69 = sor.u32 %s67, %s68
      %p70 = scmp.eq.s32.totalorder %s69, 0
      %s72 = sadd.s32 %s71, 1
      %s73 = scalar_select %p70, %s71, %s72
      %p76 = pneg %p70
      %p77 = scmp.eq.s32.totalorder %s10, 1
      %p78 = por %p76, %p77
      %p79 = scmp.ne.s32.totalorder %s71, %s74
      %p80 = scmp.eq.s32.totalorder %s10, 0
      %p81 = por %p79, %p80
      %p82 = scmp.ne.s32.totalorder %s71, %s74
      %p83 = scmp.eq.s32.totalorder %s15, 1
      %p84 = por %p82, %p83
      %p85 = scmp.ne.s32.totalorder %s74, %s75
      %p86 = scmp.eq.s32.totalorder %s15, 0
      %p87 = por %p85, %p86
      %p88 = scmp.ne.s32.totalorder %s74, %s75
      %p89 = scmp.eq.s32.totalorder %s16, 1
      %p90 = por %p88, %p89
      %p92 = scmp.ne.s32.totalorder %s75, %s91
      %p93 = scmp.eq.s32.totalorder %s16, 0
      %p94 = por %p92, %p93
      %p95 = scmp.le.s32.totalorder 1, %s10
      %p96 = scmp.lt.s32.totalorder %s10, 3
      %p97 = pnand %p95, %p96
      %p98 = pneg %p97
      // Predicated region
      $region9: #{tpu_custom_call.1} parent=5 // pred_check
        _
      $region10: #{tpu_custom_call.1} parent=5 // pred_check_branch
        %100 = sbr.rel (%p97) target = $region12
      $region11: #{tpu_custom_call.1} parent=5 // pred_region
        %s101 = ssub.s32 %s10, 1
      $region12: #{tpu_custom_call.1} parent=5 // pred_fallthru
        _
      %p102 = scmp.lt.s32.totalorder %s10, 2
      // Predicated region
      $region13: #{tpu_custom_call.1} parent=5 // pred_check
        %p103 = pneg %p102
      $region14: #{tpu_custom_call.1} parent=5 // pred_check_branch
        %105 = sbr.rel (%p103) target = $region16
      $region15: #{tpu_custom_call.1} parent=5 // pred_region
        // Predicated region
        $region17: #{tpu_custom_call.1} parent=15 // pred_check
          %p106 = pneg %p53
        $region18: #{tpu_custom_call.1} parent=15 // pred_check_branch
          %108 = sbr.rel (%p106) target = $region20
        $region19: #{tpu_custom_call.1} parent=15 // pred_region
          %s109 = sand.u32 %s43, 1
          %s110 = scalar_lea.sflag [#allocation4], %s109
          %s111 = sand.u32 %s43, 1
          %s112 = smul.addr %s111, 8
          %s113 = scalar_lea.vmem [#allocation3], %s112
          %s115 = ssub.s32 128, 128
          %116 = vsyncadd %s110, %s115
          %s117 = sadd.s32 %s18, %s19
          %s118 = sadd.s32 %s117, %s17
          %s119 = smul.addr %s118, 128
          %s120 = scalar_lea.hbm %s0, %s119
          %s122 = sshll.u32 %s113, 4
          %s123 = int_to_ptr.vmem [resolvable:$true] %s122
          %125 = dma.hbm_to_vmem [thread:$0]  %s120, 128, %s123, %s110
        $region20: #{tpu_custom_call.1} parent=15 // pred_fallthru
          _
      $region16: #{tpu_custom_call.1} parent=5 // pred_fallthru
        _
      %p126 = scmp.le.s32.totalorder 1, %s10
      %p127 = scmp.lt.s32.totalorder %s10, 3
      %p128 = pnand %p126, %p127
      %p129 = pneg %p128
      // Predicated region
      $region21: #{tpu_custom_call.1} parent=5 // pred_check
        _
      $region22: #{tpu_custom_call.1} parent=5 // pred_check_branch
        %131 = sbr.rel (%p128) target = $region24
      $region23: #{tpu_custom_call.1} parent=5 // pred_region
        %s132 = ssub.s32 %s10, 1
        %s133 = sand.u32 %s46, 1
        %s134 = scalar_lea.sflag [#allocation4], %s133
        %s135 = sand.u32 %s46, 1
        %s136 = smul.addr %s135, 8
        %s137 = scalar_lea.vmem [#allocation3], %s136
        // Predicated region
        $region25: #{tpu_custom_call.1} parent=23 // pred_check
          %p138 = pneg %p59
        $region26: #{tpu_custom_call.1} parent=23 // pred_check_branch
          %140 = sbr.rel (%p138) target = $region28
        $region27: #{tpu_custom_call.1} parent=23 // pred_region
          %141 = dma.done %s134, 128
        $region28: #{tpu_custom_call.1} parent=23 // pred_fallthru
          _
        %s142 = sand.u32 %s46, 1
        %s143 = scalar_lea.sflag [#allocation4], %s142
        %s144 = sand.u32 %s46, 1
        %s145 = smul.addr %s144, 8
        %s146 = scalar_lea.vmem [#allocation3], %s145
        %p147 = pneg %p59
        %p148 = pneg %p56
        %p149 = pneg %p87
        %p150 = pneg %p84
        %p151 = scmp.lt.s32.totalorder %s20, 1
        %s152 = scalar_select %p151, %s20, 1
        %p153 = scmp.lt.s32.totalorder %s21, 0
        %s154 = scalar_select %p153, %s21, 0
        %s155 = smul.addr %s152, 3
        %s156 = sadd.s32 %s154, %s155
        %s157 = smul.addr %s156, 8
        %s158 = scalar_lea.vmem %s1, %s157
        %p159 = scmp.lt.s32.totalorder %s20, 1
        %s160 = scalar_select %p159, %s20, 1
        %p161 = scmp.lt.s32.totalorder %s21, 0
        %s162 = scalar_select %p161, %s21, 0
        %s163 = smul.addr %s160, 3
        %s164 = sadd.s32 %s162, %s163
        %s165 = smul.addr %s164, 8
        %s166 = scalar_lea.vmem %s1, %s165
        %p167 = scmp.eq.s32.totalorder %s22, 0
        // Predicated region
        $region29: #{tpu_custom_call.1} parent=23 // pred_check
          %p168 = pneg %p167
        $region30: #{tpu_custom_call.1} parent=23 // pred_check_branch
          %170 = sbr.rel (%p168) target = $region32
        $region31: #{tpu_custom_call.1} parent=23 // pred_region
          %171 = vst [vmem:[#allocation2] sm:$0xff] 0.0
          %172 = vst [vmem:[#allocation2 + $0x8] sm:$0xff] 0.0
          %173 = vst [vmem:[#allocation2 + $0x10] sm:$0x1f] 0.0
        $region32: #{tpu_custom_call.1} parent=23 // pred_fallthru
          _
        %v174 = vld [vmem:[%s137] sm:$0xff]
        %v175 = vmul.f32 %v174, 42.341724
        %v176 = vsub.f32 0.0, %v175
        %v177 = vmul.f32 %v176, %v176
        %v178 = vsub.f32 0.0, %v177
        %v179 = vmul.f32 %v178, 1.442695
        %v180 = vpow.pop %v179
        %v181 = vld [vmem:[#allocation2] sm:$0x1]
        %v182 = vrot.slane %v180, 4
        %v183 = vadd.f32 %v180, %v182
        %v184 = vrot.slane %v183, 2
        %v185 = vadd.f32 %v183, %v184
        %v186 = vrot.slane %v185, 1
        %v187 = vadd.f32 %v185, %v186
        %v188 = vadd.f32 %v181, %v187
        %189 = vst [vmem:[#allocation2] sm:$0x1] %v188
        %v190 = vsub.f32 2.1170862, %v175
        %v191 = vmul.f32 %v190, %v190
        %v192 = vsub.f32 0.0, %v191
        %v193 = vmul.f32 %v192, 1.442695
        %v194 = vpow.pop %v193
        %v195 = vld [vmem:[#allocation2 + $0x1] sm:$0x1]
        %v196 = vrot.slane %v194, 4
        %v197 = vadd.f32 %v194, %v196
        %v198 = vrot.slane %v197, 2
        %v199 = vadd.f32 %v197, %v198
        %v200 = vrot.slane %v199, 1
        %v201 = vadd.f32 %v199, %v200
        %v202 = vadd.f32 %v195, %v201
        %203 = vst [vmem:[#allocation2 + $0x1] sm:$0x1] %v202
        %v204 = vsub.f32 4.2341723, %v175
        %v205 = vmul.f32 %v204, %v204
        %v206 = vsub.f32 0.0, %v205
        %v207 = vmul.f32 %v206, 1.442695
        %v208 = vpow.pop %v207
        %v209 = vld [vmem:[#allocation2 + $0x2] sm:$0x1]
        %v210 = vrot.slane %v208, 4
        %v211 = vadd.f32 %v208, %v210
        %v212 = vrot.slane %v211, 2
        %v213 = vadd.f32 %v211, %v212
        %v214 = vrot.slane %v213, 1
        %v215 = vadd.f32 %v213, %v214
        %v216 = vadd.f32 %v209, %v215
        %217 = vst [vmem:[#allocation2 + $0x2] sm:$0x1] %v216
        %v218 = vsub.f32 6.3512583, %v175
        %v219 = vmul.f32 %v218, %v218
        %v220 = vsub.f32 0.0, %v219
        %v221 = vmul.f32 %v220, 1.442695
        %v222 = vpow.pop %v221
        %v223 = vld [vmem:[#allocation2 + $0x3] sm:$0x1]
        %v224 = vrot.slane %v222, 4
        %v225 = vadd.f32 %v222, %v224
        %v226 = vrot.slane %v225, 2
        %v227 = vadd.f32 %v225, %v226
        %v228 = vrot.slane %v227, 1
        %v229 = vadd.f32 %v227, %v228
        %v230 = vadd.f32 %v223, %v229
        %231 = vst [vmem:[#allocation2 + $0x3] sm:$0x1] %v230
        %v232 = vsub.f32 8.468345, %v175
        %v233 = vmul.f32 %v232, %v232
        %v234 = vsub.f32 0.0, %v233
        %v235 = vmul.f32 %v234, 1.442695
        %v236 = vpow.pop %v235
        %v237 = vld [vmem:[#allocation2 + $0x4] sm:$0x1]
        %v238 = vrot.slane %v236, 4
        %v239 = vadd.f32 %v236, %v238
        %v240 = vrot.slane %v239, 2
        %v241 = vadd.f32 %v239, %v240
        %v242 = vrot.slane %v241, 1
        %v243 = vadd.f32 %v241, %v242
        %v244 = vadd.f32 %v237, %v243
        %245 = vst [vmem:[#allocation2 + $0x4] sm:$0x1] %v244
        %v246 = vsub.f32 10.585431, %v175
        %v247 = vmul.f32 %v246, %v246
        %v248 = vsub.f32 0.0, %v247
        %v249 = vmul.f32 %v248, 1.442695
        %v250 = vpow.pop %v249
        %v251 = vld [vmem:[#allocation2 + $0x5] sm:$0x1]
        %v252 = vrot.slane %v250, 4
        %v253 = vadd.f32 %v250, %v252
        %v254 = vrot.slane %v253, 2
        %v255 = vadd.f32 %v253, %v254
        %v256 = vrot.slane %v255, 1
        %v257 = vadd.f32 %v255, %v256
        %v258 = vadd.f32 %v251, %v257
        %259 = vst [vmem:[#allocation2 + $0x5] sm:$0x1] %v258
        %v260 = vsub.f32 12.702517, %v175
        %v261 = vmul.f32 %v260, %v260
        %v262 = vsub.f32 0.0, %v261
        %v263 = vmul.f32 %v262, 1.442695
        %v264 = vpow.pop %v263
        %v265 = vld [vmem:[#allocation2 + $0x6] sm:$0x1]
        %v266 = vrot.slane %v264, 4
        %v267 = vadd.f32 %v264, %v266
        %v268 = vrot.slane %v267, 2
        %v269 = vadd.f32 %v267, %v268
        %v270 = vrot.slane %v269, 1
        %v271 = vadd.f32 %v269, %v270
        %v272 = vadd.f32 %v265, %v271
        %273 = vst [vmem:[#allocation2 + $0x6] sm:$0x1] %v272
        %v274 = vsub.f32 14.819603, %v175
        %v275 = vmul.f32 %v274, %v274
        %v276 = vsub.f32 0.0, %v275
        %v277 = vmul.f32 %v276, 1.442695
        %v278 = vpow.pop %v277
        %v279 = vld [vmem:[#allocation2 + $0x7] sm:$0x1]
        %v280 = vrot.slane %v278, 4
        %v281 = vadd.f32 %v278, %v280
        %v282 = vrot.slane %v281, 2
        %v283 = vadd.f32 %v281, %v282
        %v284 = vrot.slane %v283, 1
        %v285 = vadd.f32 %v283, %v284
        %v286 = vadd.f32 %v279, %v285
        %287 = vst [vmem:[#allocation2 + $0x7] sm:$0x1] %v286
        %v288 = vsub.f32 16.93669, %v175
        %v289 = vmul.f32 %v288, %v288
        %v290 = vsub.f32 0.0, %v289
        %v291 = vmul.f32 %v290, 1.442695
        %v292 = vpow.pop %v291
        %v293 = vld [vmem:[#allocation2 + $0x8] sm:$0x1]
        %v294 = vrot.slane %v292, 4
        %v295 = vadd.f32 %v292, %v294
        %v296 = vrot.slane %v295, 2
        %v297 = vadd.f32 %v295, %v296
        %v298 = vrot.slane %v297, 1
        %v299 = vadd.f32 %v297, %v298
        %v300 = vadd.f32 %v293, %v299
        %301 = vst [vmem:[#allocation2 + $0x8] sm:$0x1] %v300
        %v302 = vsub.f32 19.053776, %v175
        %v303 = vmul.f32 %v302, %v302
        %v304 = vsub.f32 0.0, %v303
        %v305 = vmul.f32 %v304, 1.442695
        %v306 = vpow.pop %v305
        %v307 = vld [vmem:[#allocation2 + $0x9] sm:$0x1]
        %v308 = vrot.slane %v306, 4
        %v309 = vadd.f32 %v306, %v308
        %v310 = vrot.slane %v309, 2
        %v311 = vadd.f32 %v309, %v310
        %v312 = vrot.slane %v311, 1
        %v313 = vadd.f32 %v311, %v312
        %v314 = vadd.f32 %v307, %v313
        %315 = vst [vmem:[#allocation2 + $0x9] sm:$0x1] %v314
        %v316 = vsub.f32 21.170862, %v175
        %v317 = vmul.f32 %v316, %v316
        %v318 = vsub.f32 0.0, %v317
        %v319 = vmul.f32 %v318, 1.442695
        %v320 = vpow.pop %v319
        %v321 = vld [vmem:[#allocation2 + $0xa] sm:$0x1]
        %v322 = vrot.slane %v320, 4
        %v323 = vadd.f32 %v320, %v322
        %v324 = vrot.slane %v323, 2
        %v325 = vadd.f32 %v323, %v324
        %v326 = vrot.slane %v325, 1
        %v327 = vadd.f32 %v325, %v326
        %v328 = vadd.f32 %v321, %v327
        %329 = vst [vmem:[#allocation2 + $0xa] sm:$0x1] %v328
        %v330 = vsub.f32 23.287949, %v175
        %v331 = vmul.f32 %v330, %v330
        %v332 = vsub.f32 0.0, %v331
        %v333 = vmul.f32 %v332, 1.442695
        %v334 = vpow.pop %v333
        %v335 = vld [vmem:[#allocation2 + $0xb] sm:$0x1]
        %v336 = vrot.slane %v334, 4
        %v337 = vadd.f32 %v334, %v336
        %v338 = vrot.slane %v337, 2
        %v339 = vadd.f32 %v337, %v338
        %v340 = vrot.slane %v339, 1
        %v341 = vadd.f32 %v339, %v340
        %v342 = vadd.f32 %v335, %v341
        %343 = vst [vmem:[#allocation2 + $0xb] sm:$0x1] %v342
        %v344 = vsub.f32 25.405033, %v175
        %v345 = vmul.f32 %v344, %v344
        %v346 = vsub.f32 0.0, %v345
        %v347 = vmul.f32 %v346, 1.442695
        %v348 = vpow.pop %v347
        %v349 = vld [vmem:[#allocation2 + $0xc] sm:$0x1]
        %v350 = vrot.slane %v348, 4
        %v351 = vadd.f32 %v348, %v350
        %v352 = vrot.slane %v351, 2
        %v353 = vadd.f32 %v351, %v352
        %v354 = vrot.slane %v353, 1
        %v355 = vadd.f32 %v353, %v354
        %v356 = vadd.f32 %v349, %v355
        %357 = vst [vmem:[#allocation2 + $0xc] sm:$0x1] %v356
        %v358 = vsub.f32 27.52212, %v175
        %v359 = vmul.f32 %v358, %v358
        %v360 = vsub.f32 0.0, %v359
        %v361 = vmul.f32 %v360, 1.442695
        %v362 = vpow.pop %v361
        %v363 = vld [vmem:[#allocation2 + $0xd] sm:$0x1]
        %v364 = vrot.slane %v362, 4
        %v365 = vadd.f32 %v362, %v364
        %v366 = vrot.slane %v365, 2
        %v367 = vadd.f32 %v365, %v366
        %v368 = vrot.slane %v367, 1
        %v369 = vadd.f32 %v367, %v368
        %v370 = vadd.f32 %v363, %v369
        %371 = vst [vmem:[#allocation2 + $0xd] sm:$0x1] %v370
        %v372 = vsub.f32 29.639206, %v175
        %v373 = vmul.f32 %v372, %v372
        %v374 = vsub.f32 0.0, %v373
        %v375 = vmul.f32 %v374, 1.442695
        %v376 = vpow.pop %v375
        %v377 = vld [vmem:[#allocation2 + $0xe] sm:$0x1]
        %v378 = vrot.slane %v376, 4
        %v379 = vadd.f32 %v376, %v378
        %v380 = vrot.slane %v379, 2
        %v381 = vadd.f32 %v379, %v380
        %v382 = vrot.slane %v381, 1
        %v383 = vadd.f32 %v381, %v382
        %v384 = vadd.f32 %v377, %v383
        %385 = vst [vmem:[#allocation2 + $0xe] sm:$0x1] %v384
        %v386 = vsub.f32 31.756292, %v175
        %v387 = vmul.f32 %v386, %v386
        %v388 = vsub.f32 0.0, %v387
        %v389 = vmul.f32 %v388, 1.442695
        %v390 = vpow.pop %v389
        %v391 = vld [vmem:[#allocation2 + $0xf] sm:$0x1]
        %v392 = vrot.slane %v390, 4
        %v393 = vadd.f32 %v390, %v392
        %v394 = vrot.slane %v393, 2
        %v395 = vadd.f32 %v393, %v394
        %v396 = vrot.slane %v395, 1
        %v397 = vadd.f32 %v395, %v396
        %v398 = vadd.f32 %v391, %v397
        %399 = vst [vmem:[#allocation2 + $0xf] sm:$0x1] %v398
        %v400 = vsub.f32 33.87338, %v175
        %v401 = vmul.f32 %v400, %v400
        %v402 = vsub.f32 0.0, %v401
        %v403 = vmul.f32 %v402, 1.442695
        %v404 = vpow.pop %v403
        %v405 = vld [vmem:[#allocation2 + $0x10] sm:$0x1]
        %v406 = vrot.slane %v404, 4
        %v407 = vadd.f32 %v404, %v406
        %v408 = vrot.slane %v407, 2
        %v409 = vadd.f32 %v407, %v408
        %v410 = vrot.slane %v409, 1
        %v411 = vadd.f32 %v409, %v410
        %v412 = vadd.f32 %v405, %v411
        %413 = vst [vmem:[#allocation2 + $0x10] sm:$0x1] %v412
        %v414 = vsub.f32 35.990463, %v175
        %v415 = vmul.f32 %v414, %v414
        %v416 = vsub.f32 0.0, %v415
        %v417 = vmul.f32 %v416, 1.442695
        %v418 = vpow.pop %v417
        %v419 = vld [vmem:[#allocation2 + $0x11] sm:$0x1]
        %v420 = vrot.slane %v418, 4
        %v421 = vadd.f32 %v418, %v420
        %v422 = vrot.slane %v421, 2
        %v423 = vadd.f32 %v421, %v422
        %v424 = vrot.slane %v423, 1
        %v425 = vadd.f32 %v423, %v424
        %v426 = vadd.f32 %v419, %v425
        %427 = vst [vmem:[#allocation2 + $0x11] sm:$0x1] %v426
        %v428 = vsub.f32 38.10755, %v175
        %v429 = vmul.f32 %v428, %v428
        %v430 = vsub.f32 0.0, %v429
        %v431 = vmul.f32 %v430, 1.442695
        %v432 = vpow.pop %v431
        %v433 = vld [vmem:[#allocation2 + $0x12] sm:$0x1]
        %v434 = vrot.slane %v432, 4
        %v435 = vadd.f32 %v432, %v434
        %v436 = vrot.slane %v435, 2
        %v437 = vadd.f32 %v435, %v436
        %v438 = vrot.slane %v437, 1
        %v439 = vadd.f32 %v437, %v438
        %v440 = vadd.f32 %v433, %v439
        %441 = vst [vmem:[#allocation2 + $0x12] sm:$0x1] %v440
        %v442 = vsub.f32 40.224636, %v175
        %v443 = vmul.f32 %v442, %v442
        %v444 = vsub.f32 0.0, %v443
        %v445 = vmul.f32 %v444, 1.442695
        %v446 = vpow.pop %v445
        %v447 = vld [vmem:[#allocation2 + $0x13] sm:$0x1]
        %v448 = vrot.slane %v446, 4
        %v449 = vadd.f32 %v446, %v448
        %v450 = vrot.slane %v449, 2
        %v451 = vadd.f32 %v449, %v450
        %v452 = vrot.slane %v451, 1
        %v453 = vadd.f32 %v451, %v452
        %v454 = vadd.f32 %v447, %v453
        %455 = vst [vmem:[#allocation2 + $0x13] sm:$0x1] %v454
        %v456 = vsub.f32 42.341724, %v175
        %v457 = vmul.f32 %v456, %v456
        %v458 = vsub.f32 0.0, %v457
        %v459 = vmul.f32 %v458, 1.442695
        %v460 = vpow.pop %v459
        %v461 = vld [vmem:[#allocation2 + $0x14] sm:$0x1]
        %v462 = vrot.slane %v460, 4
        %v463 = vadd.f32 %v460, %v462
        %v464 = vrot.slane %v463, 2
        %v465 = vadd.f32 %v463, %v464
        %v466 = vrot.slane %v465, 1
        %v467 = vadd.f32 %v465, %v466
        %v468 = vadd.f32 %v461, %v467
        %469 = vst [vmem:[#allocation2 + $0x14] sm:$0x1] %v468
        // Predicated region
        $region33: #{tpu_custom_call.1} parent=23 // pred_check
          %p470 = pneg %p167
        $region34: #{tpu_custom_call.1} parent=23 // pred_check_branch
          %472 = sbr.rel (%p470) target = $region36
        $region35: #{tpu_custom_call.1} parent=23 // pred_region
          %v473 = vld [vmem:[#allocation2] sm:$0xff]
          %v474 = vld [vmem:[#allocation2 + $0x8] sm:$0xff]
          %v475 = vld [vmem:[#allocation2 + $0x10] sm:$0x1f]
          %v476 = vadd.f32 %v473, %v474
          %vm477 = vcmask 1044480
          %v478 = vsel %vm477, %v475, 0.0
          %v479 = vadd.f32 %v476, %v478
          %v480 = vrot.slane %v479, 4
          %v481 = vadd.f32 %v479, %v480
          %v482 = vrot.slane %v481, 2
          %v483 = vadd.f32 %v481, %v482
          %v484 = vrot.slane %v483, 1
          %v485 = vadd.f32 %v483, %v484
          %v486 = vrcp.pop %v485
          %v487 = vmul.f32 %v473, %v486
          %v488 = vmul.f32 %v474, %v486
          %v489 = vmul.f32 %v475, %v486
          %490 = vst [vmem:[%s166] sm:$0xff] %v487
          %491 = vst [vmem:[%s166 + $0x8] sm:$0xff] %v488
          %492 = vst [vmem:[%s166 + $0x10] sm:$0x1f] %v489
        $region36: #{tpu_custom_call.1} parent=23 // pred_fallthru
          _
        %p493 = scmp.lt.s32.totalorder %s20, 1
        %s494 = scalar_select %p493, %s20, 1
        %p495 = scmp.lt.s32.totalorder %s21, 0
        %s496 = scalar_select %p495, %s21, 0
        %s497 = smul.addr %s494, 3
        %s498 = sadd.s32 %s496, %s497
        %s499 = smul.addr %s498, 8
        %s500 = scalar_lea.vmem %s1, %s499
        // Predicated region
        $region37: #{tpu_custom_call.1} parent=23 // pred_check
          %p501 = pneg %p84
        $region38: #{tpu_custom_call.1} parent=23 // pred_check_branch
          %503 = sbr.rel (%p501) target = $region40
        $region39: #{tpu_custom_call.1} parent=23 // pred_region
          _
        $region40: #{tpu_custom_call.1} parent=23 // pred_fallthru
          _
      $region24: #{tpu_custom_call.1} parent=5 // pred_fallthru
        _
      %p504 = scmp.le.s32.totalorder 2, %s10
      // Predicated region
      $region41: #{tpu_custom_call.1} parent=5 // pred_check
        %p505 = pneg %p504
      $region42: #{tpu_custom_call.1} parent=5 // pred_check_branch
        %507 = sbr.rel (%p505) target = $region44
      $region43: #{tpu_custom_call.1} parent=5 // pred_region
        %s508 = ssub.s32 %s10, 2
        // Predicated region
        $region45: #{tpu_custom_call.1} parent=43 // pred_check
          %p509 = pneg %p90
        $region46: #{tpu_custom_call.1} parent=43 // pred_check_branch
          %511 = sbr.rel (%p509) target = $region48
        $region47: #{tpu_custom_call.1} parent=43 // pred_region
          %p512 = scmp.lt.s32.totalorder %s23, 1
          %s513 = scalar_select %p512, %s23, 1
          %p514 = scmp.lt.s32.totalorder %s24, 0
          %s515 = scalar_select %p514, %s24, 0
          %s516 = smul.addr %s513, 3
          %s517 = sadd.s32 %s515, %s516
          %s518 = smul.addr %s517, 8
          %s519 = scalar_lea.vmem %s1, %s518
        $region48: #{tpu_custom_call.1} parent=43 // pred_fallthru
          _
      $region44: #{tpu_custom_call.1} parent=5 // pred_fallthru
        _
    $region6: #{tpu_custom_call.1} parent=1 // loop_footer
      %s14 = sadd.s32 1, %s10
    $region7: #{tpu_custom_call.1} parent=1 // loop_footer_branch
      %9 = sbr.rel target = $region3
    $region8: #{tpu_custom_call.1} parent=1 // loop_exit
      _
    %520 = vsyncpa [#allocation4], 1
    %s521 = scalar_lea.sflag [#allocation4], 1
    %522 = vsyncpa %s521, 1

</llo_original>
